<compile_context>
chip_gen: v6e
topology: v6e:2x2x1
jax: 0.10.0
libtpu: 0.0.40
codegen_flags: <defaults>
</compile_context>

<pallas_src>
import math
import functools

import jax
import jax.numpy as jnp
from jax.experimental import pallas as pl
from jax.experimental.pallas import tpu as pltpu


def _erf_f32(x):
    """Abramowitz & Stegun 7.1.26 erf approximation (|err| <= 1.5e-7)."""
    a1 = 0.254829592
    a2 = -0.284496736
    a3 = 1.421413741
    a4 = -1.453152027
    a5 = 1.061405429
    p = 0.3275911

    sign = jnp.where(x >= 0.0, 1.0, -1.0)
    ax = jnp.abs(x)
    t = pl.reciprocal(1.0 + p * ax, approx=False)          # EUP slot, exact
    poly = ((((a5 * t + a4) * t + a3) * t + a2) * t + a1) * t
    return sign * (1.0 - poly * jnp.exp(-ax * ax))


def _temporal_block_kernel(xp_ref, w_ref, s_ref, b_ref, o_ref, col_ref, *,
                           kernel_size, stride, dilation, tile_l, n_l_tiles):
    """One (batch, L-tile) output slab per grid step.

    xp_ref:  (1, C_in, Lp)         zero-padded input (resident across L tiles)
    w_ref:   (C_out, K*C_in)       weight_v, tap-major (matches im2col rows)
    s_ref:   (C_out, 1)            weight-norm scale g / ||v||
    b_ref:   (C_out, 1)            bias
    o_ref:   (1, C_out, tile_l)    output tile (lane-dense)
    col_ref: VMEM (K*C_in, tile_l) im2col scratch
    """
    c_in = xp_ref.shape[1]

    if n_l_tiles == 1:
        base = 0                                            # static offsets
    else:
        base = pl.multiple_of(pl.program_id(1) * (tile_l * stride),
                              tile_l * stride)

    # ---- im2col: col[k*C_in + c, l] = xpad[c, base + l*stride + k*dilation]
    for k in range(kernel_size):
        start = base + k * dilation
        if stride == 1:
            tap = xp_ref[0, :, pl.ds(start, tile_l)]
        else:
            tap = xp_ref[0, :, pl.ds(start, tile_l, stride)]
        col_ref[k * c_in:(k + 1) * c_in, :] = tap

    # ---- single MXU matmul, contraction = K*C_in -------------------------
    acc = jnp.dot(w_ref[...], col_ref[...], preferred_element_type=jnp.float32)

    # ---- weight-norm scale + bias (per-output-row) ------------------------
    y = acc * s_ref[...] + b_ref[...]                       # (C_out, tile_l)

    # ---- exact (erf-based) GELU, matching torch.nn.GELU() default ---------
    gelu = 0.5 * y * (1.0 + _erf_f32(y * (1.0 / math.sqrt(2.0))))

    # TODO(synk): Dropout(p=0.2) is eval-mode identity; a training-mode
    # variant would need pltpu.prng_seed / pltpu.prng_random_bits.

    # single lane-dense store
    o_ref[0] = gelu


def temporal_block(x, params, *, kernel_size, stride, dilation, padding,
                   tile_l=None):
    """x: (B, C_in, L) f32. params: v (C_out, C_in, K), g (C_out,), b (C_out,)."""
    B, C_in, L = x.shape
    v, g, b = params["v"], params["g"], params["b"]
    C_out = v.shape[0]
    K = kernel_size
    L_out = (L + 2 * padding - dilation * (K - 1) - 1) // stride + 1
    assert L_out > 0

    # Batch-invariant parameter prep (same role as torch weight_norm's
    # pre-forward hook) -- done once, outside the per-step kernel body.
    s = (g * jax.lax.rsqrt(jnp.sum(v * v, axis=(1, 2)))).reshape(C_out, 1)
    w2 = jnp.transpose(v, (0, 2, 1)).reshape(C_out, K * C_in)   # tap-major
    b2 = b.reshape(C_out, 1)

    # Zero-pad the sequence once; the kernel never memsets a padded buffer.
    xp = jnp.pad(x, ((0, 0), (0, 0), (padding, padding))) if padding > 0 else x
    Lp = L + 2 * padding

    if tile_l is None:
        tile_l = L_out if L_out <= 512 else 512
    assert L_out % tile_l == 0, "tile_l must divide L_out"
    n_lt = L_out // tile_l

    kernel = functools.partial(
        _temporal_block_kernel,
        kernel_size=K, stride=stride, dilation=dilation,
        tile_l=tile_l, n_l_tiles=n_lt)

    return pl.pallas_call(
        kernel,
        out_shape=jax.ShapeDtypeStruct((B, C_out, L_out), jnp.float32),
        grid=(B, n_lt),
        in_specs=[
            pl.BlockSpec((1, C_in, Lp), lambda bb, jj: (bb, 0, 0)),    # padded x
            pl.BlockSpec((C_out, K * C_in), lambda bb, jj: (0, 0)),    # weight_v
            pl.BlockSpec((C_out, 1), lambda bb, jj: (0, 0)),           # wn scale
            pl.BlockSpec((C_out, 1), lambda bb, jj: (0, 0)),           # bias
        ],
        out_specs=pl.BlockSpec((1, C_out, tile_l), lambda bb, jj: (bb, 0, jj)),
        scratch_shapes=[pltpu.VMEM((K * C_in, tile_l), jnp.float32)],
        compiler_params=pltpu.CompilerParams(
            dimension_semantics=("parallel", "parallel")),
    )(xp, w2, s, b2)


def _reference(x, params, *, kernel_size, stride, dilation, padding):
    """Pure-JAX reference mirroring the PyTorch forward (eval mode)."""
    v, g, b = params["v"], params["g"], params["b"]
    norm = jnp.sqrt(jnp.sum(v * v, axis=(1, 2), keepdims=True))
    w = g.reshape(-1, 1, 1) * v / norm                       # (C_out, C_in, K)
    y = jax.lax.conv_general_dilated(
        x, w,
        window_strides=(stride,),
        padding=[(padding, padding)],
        rhs_dilation=(dilation,),
        dimension_numbers=("NCH", "OIH", "NCH"))
    y = y + b.reshape(1, -1, 1)
    return 0.5 * y * (1.0 + jax.scipy.special.erf(y / jnp.sqrt(2.0)))


if __name__ == "__main__":
    # Small shapes consistent with the module; L chosen so L_out = 128 and the
    # output tile is lane-dense: batch=2, n_inputs=8, n_outputs=16, seq=128,
    # kernel_size=3, stride=1, dilation=2, padding=2 -> L_out = 128.
    B, C_IN, C_OUT, L = 2, 8, 16, 128
    KSZ, STRIDE, DIL, PAD = 3, 1, 2, 2

    key0 = jax.random.PRNGKey(0)
    ks = jax.random.split(key0, 4)

    x = jax.random.normal(ks[0], (B, C_IN, L), dtype=jnp.float32)
    params = {
        # init_weights(): conv weight ~ N(0, 1) (here as weight_v of weight_norm)
        "v": jax.random.normal(ks[1], (C_OUT, C_IN, KSZ), dtype=jnp.float32),
        "g": jax.random.uniform(ks[2], (C_OUT,), jnp.float32, 0.5, 1.5),
        "b": jax.random.uniform(ks[3], (C_OUT,), jnp.float32,
                                -1.0 / math.sqrt(C_IN * KSZ),
                                1.0 / math.sqrt(C_IN * KSZ)),
    }

    out = temporal_block(x, params, kernel_size=KSZ, stride=STRIDE,
                         dilation=DIL, padding=PAD)
    out = jax.block_until_ready(out)

    ref = _reference(x, params, kernel_size=KSZ, stride=STRIDE,
                     dilation=DIL, padding=PAD)
    assert out.shape == ref.shape, (out.shape, ref.shape)
    max_err = float(jnp.max(jnp.abs(out - ref)))
    assert jnp.allclose(out, ref, atol=5e-5, rtol=5e-5), \
        f"max abs err = {max_err}"

    print("KERNEL_OK")
</pallas_src>

<mosaic_0001>
module attributes {stable_mosaic.version = 11 : i64} {
  func.func @_temporal_block_kernel(%arg0: i32, %arg1: i32, %arg2: memref<1x8x132xf32, #tpu.memory_space<vmem>>, %arg3: memref<16x24xf32, #tpu.memory_space<vmem>>, %arg4: memref<16x1xf32, #tpu.memory_space<vmem>>, %arg5: memref<16x1xf32, #tpu.memory_space<vmem>>, %arg6: memref<1x16x128xf32, #tpu.memory_space<vmem>>, %arg7: memref<24x128xf32, #tpu.memory_space<vmem>>) attributes {dimension_semantics = [#tpu.dimension_semantics<parallel>, #tpu.dimension_semantics<parallel>], iteration_bounds = array<i64: 2, 1>, scalar_prefetch = 0 : i64, scratch_operands = 1 : i64, tpu.core_type = #tpu.core_type<tc>, window_params = [{transform_indices = @transform_0, window_bounds = array<i64: 1, 8, 132>}, {pipeline_mode = #tpu.pipeline_mode<synchronous>, transform_indices = @transform_1, window_bounds = array<i64: 16, 24>}, {pipeline_mode = #tpu.pipeline_mode<synchronous>, transform_indices = @transform_2, window_bounds = array<i64: 16, 1>}, {pipeline_mode = #tpu.pipeline_mode<synchronous>, transform_indices = @transform_3, window_bounds = array<i64: 16, 1>}, {transform_indices = @transform_4, window_bounds = array<i64: 1, 16, 128>}]} {
    %c0 = arith.constant 0 : index
    %c0_0 = arith.constant 0 : index
    %c0_1 = arith.constant 0 : index
    %0 = vector.load %arg2[%c0, %c0_0, %c0_1] : memref<1x8x132xf32, #tpu.memory_space<vmem>>, vector<1x8x128xf32>
    %1 = vector.shape_cast %0 : vector<1x8x128xf32> to vector<8x128xf32>
    %c0_2 = arith.constant 0 : index
    %c0_3 = arith.constant 0 : index
    %2 = vector.load %arg7[%c0_2, %c0_3] : memref<24x128xf32, #tpu.memory_space<vmem>>, vector<8x128xf32>
    tpu.vector_store %arg7[%c0_2, %c0_3], %1 {strides = array<i32>} : memref<24x128xf32, #tpu.memory_space<vmem>>, vector<8x128xf32>,
    %c0_4 = arith.constant 0 : index
    %c0_5 = arith.constant 0 : index
    %c2 = arith.constant 2 : index
    %3 = vector.load %arg2[%c0_4, %c0_5, %c2] : memref<1x8x132xf32, #tpu.memory_space<vmem>>, vector<1x8x128xf32>
    %4 = vector.shape_cast %3 : vector<1x8x128xf32> to vector<8x128xf32>
    %c8 = arith.constant 8 : index
    %c0_6 = arith.constant 0 : index
    %5 = vector.load %arg7[%c8, %c0_6] : memref<24x128xf32, #tpu.memory_space<vmem>>, vector<8x128xf32>
    tpu.vector_store %arg7[%c8, %c0_6], %4 {strides = array<i32>} : memref<24x128xf32, #tpu.memory_space<vmem>>, vector<8x128xf32>,
    %c0_7 = arith.constant 0 : index
    %c0_8 = arith.constant 0 : index
    %c4 = arith.constant 4 : index
    %6 = vector.load %arg2[%c0_7, %c0_8, %c4] : memref<1x8x132xf32, #tpu.memory_space<vmem>>, vector<1x8x128xf32>
    %7 = vector.shape_cast %6 : vector<1x8x128xf32> to vector<8x128xf32>
    %c16 = arith.constant 16 : index
    %c0_9 = arith.constant 0 : index
    %8 = vector.load %arg7[%c16, %c0_9] : memref<24x128xf32, #tpu.memory_space<vmem>>, vector<8x128xf32>
    tpu.vector_store %arg7[%c16, %c0_9], %7 {strides = array<i32>} : memref<24x128xf32, #tpu.memory_space<vmem>>, vector<8x128xf32>,
    %c0_10 = arith.constant 0 : index
    %c0_11 = arith.constant 0 : index
    %9 = vector.load %arg3[%c0_10, %c0_11] : memref<16x24xf32, #tpu.memory_space<vmem>>, vector<16x24xf32>
    %c0_12 = arith.constant 0 : index
    %c0_13 = arith.constant 0 : index
    %10 = vector.load %arg7[%c0_12, %c0_13] : memref<24x128xf32, #tpu.memory_space<vmem>>, vector<24x128xf32>
    %cst = arith.constant dense<0.000000e+00> : vector<16x128xf32>
    %11 = tpu.matmul %9, %10, %cst {dimension_numbers = #tpu.dot_dimension_numbers<[1], [0], [0], [1], [0, 0, 1, 1], [], []>} : vector<16x24xf32>, vector<24x128xf32>, vector<16x128xf32> -> vector<16x128xf32>
    %c0_14 = arith.constant 0 : index
    %c0_15 = arith.constant 0 : index
    %12 = vector.load %arg4[%c0_14, %c0_15] : memref<16x1xf32, #tpu.memory_space<vmem>>, vector<16x1xf32>
    %13 = vector.broadcast %12 : vector<16x1xf32> to vector<16x128xf32>
    %14 = arith.mulf %11, %13 : vector<16x128xf32>
    %c0_16 = arith.constant 0 : index
    %c0_17 = arith.constant 0 : index
    %15 = vector.load %arg5[%c0_16, %c0_17] : memref<16x1xf32, #tpu.memory_space<vmem>>, vector<16x1xf32>
    %16 = vector.broadcast %15 : vector<16x1xf32> to vector<16x128xf32>
    %17 = arith.addf %14, %16 : vector<16x128xf32>
    %cst_18 = arith.constant 5.000000e-01 : f32
    %18 = vector.broadcast %cst_18 : f32 to vector<16x128xf32>
    %19 = arith.mulf %18, %17 : vector<16x128xf32>
    %cst_19 = arith.constant 0.707106769 : f32
    %20 = vector.broadcast %cst_19 : f32 to vector<16x128xf32>
    %21 = arith.mulf %17, %20 : vector<16x128xf32>
    %cst_20 = arith.constant 0.000000e+00 : f32
    %22 = vector.broadcast %cst_20 : f32 to vector<16x128xf32>
    %23 = arith.cmpf oge, %21, %22 : vector<16x128xf32>
    %cst_21 = arith.constant 1.000000e+00 : f32
    %cst_22 = arith.constant -1.000000e+00 : f32
    %24 = vector.broadcast %cst_21 : f32 to vector<16x128xf32>
    %25 = vector.broadcast %cst_22 : f32 to vector<16x128xf32>
    %26 = arith.select %23, %24, %25 : vector<16x128xi1>, vector<16x128xf32>
    %27 = math.absf %21 : vector<16x128xf32>
    %cst_23 = arith.constant 0.327591091 : f32
    %28 = vector.broadcast %cst_23 : f32 to vector<16x128xf32>
    %29 = arith.mulf %28, %27 : vector<16x128xf32>
    %cst_24 = arith.constant 1.000000e+00 : f32
    %30 = vector.broadcast %cst_24 : f32 to vector<16x128xf32>
    %31 = arith.addf %30, %29 : vector<16x128xf32>
    %32 = tpu.reciprocal %31 : vector<16x128xf32> -> vector<16x128xf32>
    %cst_25 = arith.constant 1.06140542 : f32
    %33 = vector.broadcast %cst_25 : f32 to vector<16x128xf32>
    %34 = arith.mulf %33, %32 : vector<16x128xf32>
    %cst_26 = arith.constant -1.45315206 : f32
    %35 = vector.broadcast %cst_26 : f32 to vector<16x128xf32>
    %36 = arith.addf %34, %35 : vector<16x128xf32>
    %37 = arith.mulf %36, %32 : vector<16x128xf32>
    %cst_27 = arith.constant 1.42141378 : f32
    %38 = vector.broadcast %cst_27 : f32 to vector<16x128xf32>
    %39 = arith.addf %37, %38 : vector<16x128xf32>
    %40 = arith.mulf %39, %32 : vector<16x128xf32>
    %cst_28 = arith.constant -0.284496725 : f32
    %41 = vector.broadcast %cst_28 : f32 to vector<16x128xf32>
    %42 = arith.addf %40, %41 : vector<16x128xf32>
    %43 = arith.mulf %42, %32 : vector<16x128xf32>
    %cst_29 = arith.constant 0.254829586 : f32
    %44 = vector.broadcast %cst_29 : f32 to vector<16x128xf32>
    %45 = arith.addf %43, %44 : vector<16x128xf32>
    %46 = arith.mulf %45, %32 : vector<16x128xf32>
    %cst_30 = arith.constant 0.000000e+00 : f32
    %47 = vector.broadcast %cst_30 : f32 to vector<16x128xf32>
    %48 = arith.subf %47, %27 : vector<16x128xf32>
    %49 = arith.mulf %48, %27 : vector<16x128xf32>
    %50 = math.exp %49 : vector<16x128xf32>
    %51 = arith.mulf %46, %50 : vector<16x128xf32>
    %cst_31 = arith.constant 1.000000e+00 : f32
    %52 = vector.broadcast %cst_31 : f32 to vector<16x128xf32>
    %53 = arith.subf %52, %51 : vector<16x128xf32>
    %54 = arith.mulf %26, %53 : vector<16x128xf32>
    %cst_32 = arith.constant 1.000000e+00 : f32
    %55 = vector.broadcast %cst_32 : f32 to vector<16x128xf32>
    %56 = arith.addf %55, %54 : vector<16x128xf32>
    %57 = arith.mulf %19, %56 : vector<16x128xf32>
    %c0_33 = arith.constant 0 : index
    %c0_34 = arith.constant 0 : index
    %c0_35 = arith.constant 0 : index
    %58 = vector.load %arg6[%c0_33, %c0_34, %c0_35] : memref<1x16x128xf32, #tpu.memory_space<vmem>>, vector<1x16x128xf32>
    %59 = vector.shape_cast %58 : vector<1x16x128xf32> to vector<16x128xf32>
    %60 = vector.shape_cast %57 : vector<16x128xf32> to vector<1x16x128xf32>
    tpu.vector_store %arg6[%c0_33, %c0_34, %c0_35], %60 {strides = array<i32>} : memref<1x16x128xf32, #tpu.memory_space<vmem>>, vector<1x16x128xf32>,
    return
  }
  func.func @transform_0(%arg0: i32, %arg1: i32) -> (i32, i32, i32) {
    %c0_i32 = arith.constant 0 : i32
    %c0_i32_0 = arith.constant 0 : i32
    %c0_i32_1 = arith.constant 0 : i32
    return %arg0, %c0_i32, %c0_i32_0 : i32, i32, i32
  }
  func.func @transform_1(%arg0: i32, %arg1: i32) -> (i32, i32) {
    %c0_i32 = arith.constant 0 : i32
    %c0_i32_0 = arith.constant 0 : i32
    %c0_i32_1 = arith.constant 0 : i32
    return %c0_i32, %c0_i32_0 : i32, i32
  }
  func.func @transform_2(%arg0: i32, %arg1: i32) -> (i32, i32) {
    %c0_i32 = arith.constant 0 : i32
    %c0_i32_0 = arith.constant 0 : i32
    %c0_i32_1 = arith.constant 0 : i32
    return %c0_i32, %c0_i32_0 : i32, i32
  }
  func.func @transform_3(%arg0: i32, %arg1: i32) -> (i32, i32) {
    %c0_i32 = arith.constant 0 : i32
    %c0_i32_0 = arith.constant 0 : i32
    %c0_i32_1 = arith.constant 0 : i32
    return %c0_i32, %c0_i32_0 : i32, i32
  }
  func.func @transform_4(%arg0: i32, %arg1: i32) -> (i32, i32, i32) {
    %c0_i32 = arith.constant 0 : i32
    %c0_i32_0 = arith.constant 0 : i32
    return %arg0, %c0_i32, %arg1 : i32, i32, i32
  }
}

</mosaic_0001>

<llo_original>
// kernel: tpu_custom_call.1
$region0: #{tpu_custom_call.1}
  #allocation0 [shape = 'u32[]', space=smem, size = 0x4, offset = 0x4, fixed_abs, tag = 'smem constant byte address 0x4 - core index']
  #allocation1 [shape = 'u32[144,128]{1,0:T(1,128)}', space=vmem, size = 0x12000, scoped, tag = 'internal scratch']
  #allocation2 [shape = 'f32[24,128]{1,0:T(8,128)}', space=vmem, size = 0x3000, scoped, tag = 'scratch operand']
  %s0 = inlined_call_operand.vmem [shape: f32[2,8,132], index: 0, kind: input, shape index: {}]
  %s1 = inlined_call_operand.hbm [shape: f32[16,24], index: 1, kind: input, shape index: {}]
  %s2 = inlined_call_operand.vmem [shape: f32[16,1], index: 2, kind: input, shape index: {}]
  %s3 = inlined_call_operand.vmem [shape: f32[16,1], index: 3, kind: input, shape index: {}]
  %s4 = inlined_call_operand.hbm [shape: f32[2,16,128], index: 4, kind: output, shape index: {}]
  %s5 = sld [smem:[#allocation0]]
  $region53: #{tpu_custom_call.1} parent=0
    _
  %s7 = ssub.s32 1, %s5
  %s8 = scalar_select 0, %s7, %s5
  $region1: #{tpu_custom_call.1} parent=0
    #allocation3 [shape = 'u8[8192]{0}', space=vmem, size = 0x2000, scoped, tag = 'input window, operand 1, single buffered']
    #allocation4 [shape = 's32[2]{0}', space=sflag, size = 0x8, scoped, tag = 'scoped memory for tpu_custom_call.1']
    #allocation5 [shape = 's32[2]{0}', space=sflag, size = 0x8, scoped, tag = 'scoped memory for tpu_custom_call.1']
    #allocation6 [shape = 'u8[16384]{0}', space=vmem, size = 0x4000, scoped, tag = 'output window, operand 0']
    %9 = vsyncpa [#allocation4], 0
    %10 = vsyncpa [#allocation5], 0
    %s11 = scalar_lea.sflag [#allocation5], 1
    %12 = vsyncpa %s11, 0
    loop: start=0, step=1, limit=4
    $region2: #{tpu_custom_call.1} parent=1 // loop_pre_header
      _
    $region3: #{tpu_custom_call.1} parent=1 // loop_header
      %s14 = sphi 0, %s18
      %p15 = scmp.ge.s32.totalorder %s14, 4
      %s21 = sphi 0, %s33
      %s22 = sphi 0, %s29
      %s23 = sphi 0, %s21
      %s24 = sphi 0, %s22
      %s25 = sphi 0, %s23
      %s26 = sphi 0, %s24
      %s36 = sphi 0, %s38
      %s39 = sphi 0, %s36
      %s40 = sphi 0, %s39
      %s56 = sphi 0, %s40
      %s60 = sphi 0, %s60
      %s62 = sphi 0, %s60
      %s63 = sphi 0, %s62
      %s77 = sphi 0, %s63
      %s81 = sphi 0, %s81
      %s83 = sphi 0, %s81
      %s84 = sphi 0, %s83
      %s98 = sphi 0, %s84
      %s102 = sphi 0, %s102
      %s104 = sphi 0, %s102
      %s105 = sphi 0, %s104
      %s119 = sphi 0, %s105
      %s127 = sphi 0, %s129
      %s130 = sphi 0, %s127
      %s131 = sphi 0, %s130
      %s147 = sphi 0, %s131
    $region4: #{tpu_custom_call.1} parent=1 // loop_header_branch
      %17 = sbr.rel (%p15) target = $region8
    $region5: #{tpu_custom_call.1} parent=1 // loop_body
      %s19 = ssub.s32 %s14, 1
      %s20 = ssub.s32 %s14, 2
      %s27 = sadd.s32 1, %s22
      %p28 = scmp.ge.s32.totalorder %s27, 1
      %s29 = scalar_select %p28, 0, %s27
      %s30 = sadd.s32 1, %s21
      %s31 = scalar_select %p28, %s30, %s21
      %p32 = scmp.ge.s32.totalorder %s31, 2
      %s33 = scalar_select %p32, 0, %s31
      %s34 = ssub.s32 %s21, %s33
      %p35 = scmp.eq.s32.totalorder %s34, 0
      %s37 = sadd.s32 %s36, 1
      %s38 = scalar_select %p35, %s36, %s37
      %p41 = pneg %p35
      %p42 = scmp.eq.s32.totalorder %s14, 1
      %p43 = por %p41, %p42
      %p44 = scmp.ne.s32.totalorder %s36, %s39
      %p45 = scmp.eq.s32.totalorder %s14, 0
      %p46 = por %p44, %p45
      %p47 = scmp.ne.s32.totalorder %s36, %s39
      %p48 = scmp.eq.s32.totalorder %s19, 1
      %p49 = por %p47, %p48
      %p50 = scmp.ne.s32.totalorder %s39, %s40
      %p51 = scmp.eq.s32.totalorder %s19, 0
      %p52 = por %p50, %p51
      %p53 = scmp.ne.s32.totalorder %s39, %s40
      %p54 = scmp.eq.s32.totalorder %s20, 1
      %p55 = por %p53, %p54
      %p57 = scmp.ne.s32.totalorder %s40, %s56
      %p58 = scmp.eq.s32.totalorder %s20, 0
      %p59 = por %p57, %p58
      %s61 = sadd.s32 %s60, 1
      %p64 = scmp.eq.s32.totalorder %s14, 1
      %p65 = scmp.ne.s32.totalorder %s60, %s62
      %p66 = scmp.eq.s32.totalorder %s14, 0
      %p67 = por %p65, %p66
      %p68 = scmp.ne.s32.totalorder %s60, %s62
      %p69 = scmp.eq.s32.totalorder %s19, 1
      %p70 = por %p68, %p69
      %p71 = scmp.ne.s32.totalorder %s62, %s63
      %p72 = scmp.eq.s32.totalorder %s19, 0
      %p73 = por %p71, %p72
      %p74 = scmp.ne.s32.totalorder %s62, %s63
      %p75 = scmp.eq.s32.totalorder %s20, 1
      %p76 = por %p74, %p75
      %p78 = scmp.ne.s32.totalorder %s63, %s77
      %p79 = scmp.eq.s32.totalorder %s20, 0
      %p80 = por %p78, %p79
      %s82 = sadd.s32 %s81, 1
      %p85 = scmp.eq.s32.totalorder %s14, 1
      %p86 = scmp.ne.s32.totalorder %s81, %s83
      %p87 = scmp.eq.s32.totalorder %s14, 0
      %p88 = por %p86, %p87
      %p89 = scmp.ne.s32.totalorder %s81, %s83
      %p90 = scmp.eq.s32.totalorder %s19, 1
      %p91 = por %p89, %p90
      %p92 = scmp.ne.s32.totalorder %s83, %s84
      %p93 = scmp.eq.s32.totalorder %s19, 0
      %p94 = por %p92, %p93
      %p95 = scmp.ne.s32.totalorder %s83, %s84
      %p96 = scmp.eq.s32.totalorder %s20, 1
      %p97 = por %p95, %p96
      %p99 = scmp.ne.s32.totalorder %s84, %s98
      %p100 = scmp.eq.s32.totalorder %s20, 0
      %p101 = por %p99, %p100
      %s103 = sadd.s32 %s102, 1
      %p106 = scmp.eq.s32.totalorder %s14, 1
      %p107 = scmp.ne.s32.totalorder %s102, %s104
      %p108 = scmp.eq.s32.totalorder %s14, 0
      %p109 = por %p107, %p108
      %p110 = scmp.ne.s32.totalorder %s102, %s104
      %p111 = scmp.eq.s32.totalorder %s19, 1
      %p112 = por %p110, %p111
      %p113 = scmp.ne.s32.totalorder %s104, %s105
      %p114 = scmp.eq.s32.totalorder %s19, 0
      %p115 = por %p113, %p114
      %p116 = scmp.ne.s32.totalorder %s104, %s105
      %p117 = scmp.eq.s32.totalorder %s20, 1
      %p118 = por %p116, %p117
      %p120 = scmp.ne.s32.totalorder %s105, %s119
      %p121 = scmp.eq.s32.totalorder %s20, 0
      %p122 = por %p120, %p121
      %s123 = ssub.s32 %s21, %s33
      %s124 = ssub.s32 %s22, %s29
      %s125 = sor.u32 %s123, %s124
      %p126 = scmp.eq.s32.totalorder %s125, 0
      %s128 = sadd.s32 %s127, 1
      %s129 = scalar_select %p126, %s127, %s128
      %p132 = pneg %p126
      %p133 = scmp.eq.s32.totalorder %s14, 1
      %p134 = por %p132, %p133
      %p135 = scmp.ne.s32.totalorder %s127, %s130
      %p136 = scmp.eq.s32.totalorder %s14, 0
      %p137 = por %p135, %p136
      %p138 = scmp.ne.s32.totalorder %s127, %s130
      %p139 = scmp.eq.s32.totalorder %s19, 1
      %p140 = por %p138, %p139
      %p141 = scmp.ne.s32.totalorder %s130, %s131
      %p142 = scmp.eq.s32.totalorder %s19, 0
      %p143 = por %p141, %p142
      %p144 = scmp.ne.s32.totalorder %s130, %s131
      %p145 = scmp.eq.s32.totalorder %s20, 1
      %p146 = por %p144, %p145
      %p148 = scmp.ne.s32.totalorder %s131, %s147
      %p149 = scmp.eq.s32.totalorder %s20, 0
      %p150 = por %p148, %p149
      %p151 = scmp.le.s32.totalorder 1, %s14
      %p152 = scmp.lt.s32.totalorder %s14, 3
      %p153 = pnand %p151, %p152
      %p154 = pneg %p153
      // Predicated region
      $region9: #{tpu_custom_call.1} parent=5 // pred_check
        _
      $region10: #{tpu_custom_call.1} parent=5 // pred_check_branch
        %156 = sbr.rel (%p153) target = $region12
      $region11: #{tpu_custom_call.1} parent=5 // pred_region
        %s157 = ssub.s32 %s14, 1
        // Predicated region
        $region13: #{tpu_custom_call.1} parent=11 // pred_check
          %p158 = pneg %p73
        $region14: #{tpu_custom_call.1} parent=11 // pred_check_branch
          %160 = sbr.rel (%p158) target = $region16
        $region15: #{tpu_custom_call.1} parent=11 // pred_region
          %s162 = ssub.s32 256, 256
          %163 = vsyncadd [#allocation4], %s162
          %s164 = sshll.u32 [#allocation3], 4
          %s165 = int_to_ptr.vmem [resolvable:$true] %s164
          %170 = dma.hbm_to_vmem [thread:$0]  %s1, 256, %s165, [#allocation4], 128, 128, 8
        $region16: #{tpu_custom_call.1} parent=11 // pred_fallthru
          _
        // Predicated region
        $region17: #{tpu_custom_call.1} parent=11 // pred_check
          %p171 = pneg %p94
        $region18: #{tpu_custom_call.1} parent=11 // pred_check_branch
          %173 = sbr.rel (%p171) target = $region20
        $region19: #{tpu_custom_call.1} parent=11 // pred_region
          _
        $region20: #{tpu_custom_call.1} parent=11 // pred_fallthru
          _
        // Predicated region
        $region21: #{tpu_custom_call.1} parent=11 // pred_check
          %p174 = pneg %p115
        $region22: #{tpu_custom_call.1} parent=11 // pred_check_branch
          %176 = sbr.rel (%p174) target = $region24
        $region23: #{tpu_custom_call.1} parent=11 // pred_region
          _
        $region24: #{tpu_custom_call.1} parent=11 // pred_fallthru
          _
      $region12: #{tpu_custom_call.1} parent=5 // pred_fallthru
        _
      %p177 = scmp.lt.s32.totalorder %s14, 2
      // Predicated region
      $region25: #{tpu_custom_call.1} parent=5 // pred_check
        %p178 = pneg %p177
      $region26: #{tpu_custom_call.1} parent=5 // pred_check_branch
        %180 = sbr.rel (%p178) target = $region28
      $region27: #{tpu_custom_call.1} parent=5 // pred_region
        // Predicated region
        $region29: #{tpu_custom_call.1} parent=27 // pred_check
          %p181 = pneg %p46
        $region30: #{tpu_custom_call.1} parent=27 // pred_check_branch
          %183 = sbr.rel (%p181) target = $region32
        $region31: #{tpu_custom_call.1} parent=27 // pred_region
          %p184 = scmp.lt.s32.totalorder %s21, 1
          %s185 = scalar_select %p184, %s21, 1
          %s186 = smul.addr %s185, 2
          %s187 = smul.addr %s186, 8
          %s188 = scalar_lea.vmem %s0, %s187
        $region32: #{tpu_custom_call.1} parent=27 // pred_fallthru
          _
      $region28: #{tpu_custom_call.1} parent=5 // pred_fallthru
        _
      %p189 = scmp.le.s32.totalorder 1, %s14
      %p190 = scmp.lt.s32.totalorder %s14, 3
      %p191 = pnand %p189, %p190
      %p192 = pneg %p191
      // Predicated region
      $region33: #{tpu_custom_call.1} parent=5 // pred_check
        _
      $region34: #{tpu_custom_call.1} parent=5 // pred_check_branch
        %194 = sbr.rel (%p191) target = $region36
      $region35: #{tpu_custom_call.1} parent=5 // pred_region
        %s195 = ssub.s32 %s14, 1
        // Predicated region
        $region37: #{tpu_custom_call.1} parent=35 // pred_check
          %p196 = pneg %p73
        $region38: #{tpu_custom_call.1} parent=35 // pred_check_branch
          %198 = sbr.rel (%p196) target = $region40
        $region39: #{tpu_custom_call.1} parent=35 // pred_region
          %199 = dma.done [#allocation4], 256
        $region40: #{tpu_custom_call.1} parent=35 // pred_fallthru
          _
        %p200 = scmp.lt.s32.totalorder %s23, 1
        %s201 = scalar_select %p200, %s23, 1
        %s202 = smul.addr %s201, 2
        %s203 = smul.addr %s202, 8
        %s204 = scalar_lea.vmem %s0, %s203
        %p205 = pneg %p52
        %p206 = pneg %p49
        %p207 = pneg %p73
        %p208 = pneg %p70
        %p209 = pneg %p94
        %p210 = pneg %p91
        %p211 = pneg %p115
        %p212 = pneg %p112
        %p213 = pneg %p143
        %p214 = pneg %p140
        %s215 = sand.u32 %s130, 1
        %s216 = scalar_lea.sflag [#allocation5], %s215
        %s217 = sand.u32 %s130, 1
        %s218 = smul.addr %s217, 16
        %s219 = scalar_lea.vmem [#allocation6], %s218
        %p220 = scmp.lt.s32.totalorder %s23, 1
        %s221 = scalar_select %p220, %s23, 1
        %s222 = smul.addr %s221, 2
        %s223 = smul.addr %s222, 8
        %s224 = scalar_lea.vmem %s0, %s223
        %v225 = vld [vmem:[%s224] sm:$0xff]
        %226 = vst [vmem:[#allocation2] sm:$0xff] %v225
        %v227 = vld [vmem:[%s224] sm:$0xff]
        %v228 = vld [vmem:[%s224 + $0x8] sm:$0xff]
        %231 = vrot.lane.b32.xlu0 %v227, 126
        %v232 = vpop.permute.xlu0 %231
        %233 = vrot.lane.b32.xlu0 %v228, 126
        %v234 = vpop.permute.xlu0 %233
        %vm235 = vcmask 1031168
        %v236 = vsel %vm235, %v232, %v234
        %238 = vst [vmem:[#allocation2 + $0x8] sm:$0xff] %v236
        %v239 = vld [vmem:[%s224] sm:$0xff]
        %v240 = vld [vmem:[%s224 + $0x8] sm:$0xff]
        %243 = vrot.lane.b32.xlu0 %v239, 124
        %v244 = vpop.permute.xlu0 %243
        %245 = vrot.lane.b32.xlu0 %v240, 124
        %v246 = vpop.permute.xlu0 %245
        %vm247 = vcmask 1014784
        %v248 = vsel %vm247, %v244, %v246
        %250 = vst [vmem:[#allocation2 + $0x10] sm:$0xff] %v248
        %v251 = vld [vmem:[#allocation3] sm:$0xff]
        %v252 = vld [vmem:[#allocation3 + $0x8] sm:$0xff]
        %v253 = vld [vmem:[#allocation2] sm:$0xff]
        %v254 = vld [vmem:[#allocation2 + $0x8] sm:$0xff]
        %v255 = vld [vmem:[#allocation2 + $0x10] sm:$0xff]
        %vm256 = vcmask 195584
        %v258 = vsel %vm256, %v251, 0
        %v261 = vsel %vm256, %v252, 0
        %263 = vmatprep.subr.mxu0 0.0
        %264 = vmatpush1.msra.mxu0 0.0
        %265 = vmatprep.subr.mxu0 0.0
        %266 = vmatpush1.msra.mxu0 0.0
        %267 = vmatprep.subr.mxu0 0.0
        %268 = vmatpush1.msra.mxu0 0.0
        %269 = vmatprep.subr.mxu0 0.0
        %270 = vmatpush1.msra.mxu0 0.0
        %271 = vmatprep.subr.mxu0 0.0
        %272 = vmatpush1.msra.mxu0 0.0
        %273 = vmatprep.subr.mxu0 0.0
        %274 = vmatpush1.msra.mxu0 0.0
        %275 = vmatprep.subr.mxu0 0.0
        %276 = vmatpush1.msra.mxu0 0.0
        %277 = vmatprep.subr.mxu0 0.0
        %278 = vmatpush1.msra.mxu0 0.0
        %279 = vmatprep.subr.mxu0 0.0
        %280 = vmatpush1.msra.mxu0 0.0
        %281 = vmatprep.subr.mxu0 0.0
        %282 = vmatpush1.msra.mxu0 0.0
        %283 = vmatprep.subr.mxu0 0.0
        %284 = vmatpush1.msra.mxu0 0.0
        %285 = vmatprep.subr.mxu0 0.0
        %286 = vmatpush1.msra.mxu0 0.0
        %287 = vmatprep.subr.mxu0 0.0
        %288 = vmatpush1.msra.mxu0 0.0
        %289 = vmatprep.subr.mxu0 0.0
        %290 = vmatpush1.msra.mxu0 %v255
        %291 = vmatprep.subr.mxu0 0.0
        %292 = vmatpush1.msra.mxu0 %v254
        %293 = vmatprep.subr.mxu0 0.0
        %294 = vmatpush1.msra.mxu0 %v253
        %295 = vmatprep.subr.mxu0 0.0
        %296 = vmatpush2.msra.mxu0 0.0
        %297 = vmatprep.subr.mxu0 0.0
        %298 = vmatpush2.msra.mxu0 0.0
        %299 = vmatprep.subr.mxu0 0.0
        %300 = vmatpush2.msra.mxu0 0.0
        %301 = vmatprep.subr.mxu0 0.0
        %302 = vmatpush2.msra.mxu0 0.0
        %303 = vmatprep.subr.mxu0 0.0
        %304 = vmatpush2.msra.mxu0 0.0
        %305 = vmatprep.subr.mxu0 0.0
        %306 = vmatpush2.msra.mxu0 0.0
        %307 = vmatprep.subr.mxu0 0.0
        %308 = vmatpush2.msra.mxu0 0.0
        %309 = vmatprep.subr.mxu0 0.0
        %310 = vmatpush2.msra.mxu0 0.0
        %311 = vmatprep.subr.mxu0 0.0
        %312 = vmatpush2.msra.mxu0 0.0
        %313 = vmatprep.subr.mxu0 0.0
        %314 = vmatpush2.msra.mxu0 0.0
        %315 = vmatprep.subr.mxu0 0.0
        %316 = vmatpush2.msra.mxu0 0.0
        %317 = vmatprep.subr.mxu0 0.0
        %318 = vmatpush2.msra.mxu0 0.0
        %319 = vmatprep.subr.mxu0 0.0
        %320 = vmatpush2.msra.mxu0 0.0
        %321 = vmatprep.subr.mxu0 0.0
        %322 = vmatpush2.msra.mxu0 0.0
        %323 = vmatprep.subr.mxu0 0.0
        %324 = vmatpush2.msra.mxu0 0.0
        %325 = vmatprep.subr.mxu0 0.0
        %326 = vmatpush2.msra.mxu0 0.0
        %327 = vmatprep.mubr.f32.mxu0 0.0
        %328 = vmatmul.mubr.f32.gmra.mxu0 %v258
        %v329 = vpop.f32.mrf.mxu0
        %v330 = vadd.f32 0.0, %v329
        %v331 = vpop.f32.mrf.mxu0
        %332 = vmatprep.mubr.f32.mxu0 0.0
        %333 = vmatmul.mubr.f32.gmra.mxu0 %v261
        %v334 = vpop.f32.mrf.mxu0
        %v335 = vadd.f32 0.0, %v334
        %v336 = vpop.f32.mrf.mxu0
        %337 = vdwg.mxu0
        %v338 = vld [vmem:[%s2] sm:$0xff]
        %v339 = vld [vmem:[%s2 + $0x8] sm:$0xff]
        %341 = vset.pattern.permute.xlu0 0
        %342 = vperm.xlu0 %341, %v338
        %v343 = vpop.permute.xlu0 %342
        %346 = vset.pattern.permute.xlu0 0
        %347 = vperm.xlu0 %346, %v339
        %v348 = vpop.permute.xlu0 %347
        %v350 = vmul.f32 %v330, %v343
        %v351 = vmul.f32 %v335, %v348
        %v352 = vld [vmem:[%s3] sm:$0xff]
        %v353 = vld [vmem:[%s3 + $0x8] sm:$0xff]
        %355 = vset.pattern.permute.xlu0 0
        %356 = vperm.xlu0 %355, %v352
        %v357 = vpop.permute.xlu0 %356
        %360 = vset.pattern.permute.xlu0 0
        %361 = vperm.xlu0 %360, %v353
        %v362 = vpop.permute.xlu0 %361
        %v364 = vadd.f32 %v350, %v357
        %v365 = vadd.f32 %v351, %v362
        %v366 = vmul.f32 %v364, 0.5
        %v367 = vmul.f32 %v365, 0.5
        %v368 = vmul.f32 %v364, 0.70710677
        %v369 = vmul.f32 %v365, 0.70710677
        %vm370 = vcmp.ge.f32.partialorder %v368, 0.0
        %vm371 = vcmp.ge.f32.partialorder %v369, 0.0
        %v372 = vsel %vm370, 1.0, -1.0
        %v373 = vsel %vm371, 1.0, -1.0
        %v374 = vand.u32 2147483647, %v368
        %v375 = vand.u32 2147483647, %v369
        %v376 = vmul.f32 %v374, 0.3275911
        %v377 = vmul.f32 %v375, 0.3275911
        %v378 = vadd.f32 %v376, 1.0
        %v379 = vadd.f32 %v377, 1.0
        %v380 = vrcp.pop %v378
        %v381 = vrcp.pop %v379
        %v382 = vmul.f32 %v380, 1.0614054
        %v383 = vmul.f32 %v381, 1.0614054
        %v384 = vadd.f32 %v382, -1.4531521
        %v385 = vadd.f32 %v383, -1.4531521
        %v386 = vmul.f32 %v384, %v380
        %v387 = vmul.f32 %v385, %v381
        %v388 = vadd.f32 %v386, 1.4214138
        %v389 = vadd.f32 %v387, 1.4214138
        %v390 = vmul.f32 %v388, %v380
        %v391 = vmul.f32 %v389, %v381
        %v392 = vadd.f32 %v390, -0.28449672
        %v393 = vadd.f32 %v391, -0.28449672
        %v394 = vmul.f32 %v392, %v380
        %v395 = vmul.f32 %v393, %v381
        %v396 = vadd.f32 %v394, 0.2548296
        %v397 = vadd.f32 %v395, 0.2548296
        %v398 = vmul.f32 %v396, %v380
        %v399 = vmul.f32 %v397, %v381
        %v400 = vsub.f32 0.0, %v374
        %v401 = vsub.f32 0.0, %v375
        %v402 = vmul.f32 %v400, %v374
        %v403 = vmul.f32 %v401, %v375
        %v404 = vmul.f32 %v402, 1.442695
        %v405 = vpow.pop %v404
        %v406 = vmul.f32 %v403, 1.442695
        %v407 = vpow.pop %v406
        %v408 = vmul.f32 %v398, %v405
        %v409 = vmul.f32 %v399, %v407
        %v410 = vsub.f32 1.0, %v408
        %v411 = vsub.f32 1.0, %v409
        %v412 = vmul.f32 %v372, %v410
        %v413 = vmul.f32 %v373, %v411
        %v414 = vadd.f32 %v412, 1.0
        %v415 = vadd.f32 %v413, 1.0
        %v416 = vmul.f32 %v366, %v414
        %v417 = vmul.f32 %v367, %v415
        %418 = vst [vmem:[%s219] sm:$0xff] %v416
        %419 = vst [vmem:[%s219 + $0x8] sm:$0xff] %v417
        %s420 = sand.u32 %s130, 1
        %s421 = scalar_lea.sflag [#allocation5], %s420
        %s422 = sand.u32 %s130, 1
        %s423 = smul.addr %s422, 16
        %s424 = scalar_lea.vmem [#allocation6], %s423
        // Predicated region
        $region41: #{tpu_custom_call.1} parent=35 // pred_check
          %p425 = pneg %p140
        $region42: #{tpu_custom_call.1} parent=35 // pred_check_branch
          %427 = sbr.rel (%p425) target = $region44
        $region43: #{tpu_custom_call.1} parent=35 // pred_region
          %s429 = ssub.s32 256, 256
          %430 = vsyncadd %s421, %s429
          %s431 = smul.addr %s23, 2
          %s432 = sadd.s32 %s24, %s431
          %s433 = smul.addr %s432, 128
          %s434 = scalar_lea.hbm %s4, %s433
          %s435 = sshll.u32 %s424, 4
          %s436 = int_to_ptr.vmem [resolvable:$true] %s435
          %441 = dma.vmem_to_hbm [thread:$0]  %s436, 256, %s434, %s421, 128, 128, 8
        $region44: #{tpu_custom_call.1} parent=35 // pred_fallthru
          _
      $region36: #{tpu_custom_call.1} parent=5 // pred_fallthru
        _
      %p442 = scmp.le.s32.totalorder 2, %s14
      // Predicated region
      $region45: #{tpu_custom_call.1} parent=5 // pred_check
        %p443 = pneg %p442
      $region46: #{tpu_custom_call.1} parent=5 // pred_check_branch
        %445 = sbr.rel (%p443) target = $region48
      $region47: #{tpu_custom_call.1} parent=5 // pred_region
        %s446 = ssub.s32 %s14, 2
        // Predicated region
        $region49: #{tpu_custom_call.1} parent=47 // pred_check
          %p447 = pneg %p146
        $region50: #{tpu_custom_call.1} parent=47 // pred_check_branch
          %449 = sbr.rel (%p447) target = $region52
        $region51: #{tpu_custom_call.1} parent=47 // pred_region
          %s450 = sand.u32 %s131, 1
          %s451 = scalar_lea.sflag [#allocation5], %s450
          %s452 = sand.u32 %s131, 1
          %s453 = smul.addr %s452, 16
          %s454 = scalar_lea.vmem [#allocation6], %s453
          %455 = dma.done %s451, 256
        $region52: #{tpu_custom_call.1} parent=47 // pred_fallthru
          _
      $region48: #{tpu_custom_call.1} parent=5 // pred_fallthru
        _
    $region6: #{tpu_custom_call.1} parent=1 // loop_footer
      %s18 = sadd.s32 1, %s14
    $region7: #{tpu_custom_call.1} parent=1 // loop_footer_branch
      %13 = sbr.rel target = $region3
    $region8: #{tpu_custom_call.1} parent=1 // loop_exit
      _
    %456 = vsyncpa [#allocation4], 1
    %s457 = scalar_lea.sflag [#allocation4], 1
    %458 = vsyncpa %s457, 1
    %459 = vsyncpa [#allocation5], 1
    %s460 = scalar_lea.sflag [#allocation5], 1
    %461 = vsyncpa %s460, 1

</llo_original>
